<compile_context>
chip_gen: v7x
topology: tpu7x:2x2x1
jax: 0.10.0
libtpu: 0.0.40
codegen_flags: <defaults>
</compile_context>

<pallas_src>
import functools
import math

import jax
import jax.numpy as jnp
from jax.experimental import pallas as pl
from jax.experimental.pallas import tpu as pltpu

_LANE = 128      # lane width (last dim)
_SUBLANE = 8     # sublane width (second-to-last dim, f32)


def _round_up(x, m):
    return ((x + m - 1) // m) * m


# --------------------------------------------------------------------------
# Kernel
# --------------------------------------------------------------------------
def _mlp_fused_kernel(*refs, num_layers, mac_layer0):
    """Fused MLP forward for one batch tile.

    refs = (x_ref, w0_ref, b0_ref, w1_ref, b1_ref, ..., o_ref)
    Weights are pre-transposed to (Din_pad, Dout_pad); biases are (1, Dout_pad)
    f32.  Intermediate activations stay in vregs/VMEM; only the lane-dense
    logits tile is written back.
    """
    x_ref = refs[0]
    o_ref = refs[-1]
    wb = refs[1:-1]

    h = x_ref[...].astype(jnp.float32)
    for i in range(num_layers):
        w_ref = wb[2 * i]
        b_ref = wb[2 * i + 1]
        if i == 0 and mac_layer0:
            # Tiny layer-0 contraction (fin < 8): VPU broadcast-MAC.  Avoids
            # padding the input feature dim (a wrapper-side HBM op) and the
            # small-K MXU path entirely.  Exact f32 math.
            fin = w_ref.shape[0]
            acc = h[:, 0:1] * w_ref[0:1, :].astype(jnp.float32)
            for k in range(1, fin):
                acc = acc + h[:, k:k + 1] * w_ref[k:k + 1, :].astype(jnp.float32)
            h = acc
        else:
            # MXU matmul; operands may be bf16, accumulation is f32.
            h = jnp.dot(h.astype(w_ref.dtype), w_ref[...],
                        preferred_element_type=jnp.float32)
        h = h + b_ref[...]                 # f32 bias, (1, Dout_pad) broadcasts
        if i < num_layers - 1:             # ReLU after every layer except last
            h = jnp.maximum(h, 0.0)
    o_ref[...] = h.astype(o_ref.dtype)


# --------------------------------------------------------------------------
# Init-time parameter layout (kept OUT of the forward hot path)
# --------------------------------------------------------------------------
def init_params(sizes, key):
    """PyTorch-default-style init: U(-1/sqrt(fan_in), 1/sqrt(fan_in)), (Dout, Din)."""
    params = []
    for i in range(len(sizes) - 1):
        fan_in, fan_out = sizes[i], sizes[i + 1]
        key, kw, kb = jax.random.split(key, 3)
        bound = 1.0 / math.sqrt(fan_in)
        w = jax.random.uniform(kw, (fan_out, fan_in), jnp.float32, -bound, bound)
        b = jax.random.uniform(kb, (fan_out,), jnp.float32, -bound, bound)
        params.append((w, b))
    return params


def prepare_params(params, weight_dtype=jnp.float32):
    """Transpose to (Din, Dout), pad output dims to 128 lanes, once at init.

    Zero padding is exact: padded weight rows/cols and padded bias lanes
    contribute 0 through matmul / bias / ReLU.  Layer 0's contraction dim is
    NOT padded to 128: tiny fin (<8) stays as-is (kernel MAC path, f32),
    larger fin pads only to the sublane multiple.  Hidden-layer weights can be
    stored in bf16 (matmul operands only); biases stay f32.
    """
    prepped = []
    for i, (w, b) in enumerate(params):
        dout, din = w.shape
        dout_p = _round_up(dout, _LANE)
        if i == 0:
            if din < _SUBLANE:
                din_p, w_dtype = din, jnp.float32      # VPU MAC path, exact
            else:
                din_p, w_dtype = _round_up(din, _SUBLANE), weight_dtype
        else:
            din_p = _round_up(din, _LANE)              # matches padded prev act
            w_dtype = weight_dtype
        w_t = jnp.zeros((din_p, dout_p), w_dtype).at[:din, :dout].set(
            w.T.astype(w_dtype))
        b2 = jnp.zeros((1, dout_p), jnp.float32).at[0, :dout].set(
            b.astype(jnp.float32))
        prepped.append((w_t, b2))
    return prepped


# --------------------------------------------------------------------------
# Forward wrapper
# --------------------------------------------------------------------------
def _pick_batch_tile(batch, max_batch_tile, align):
    """Big tiles (amortize ~0.35us/grid step, fill the 256-wide MXU), but split
    into >= 2 tiles when the batch allows so both v7x TensorCores get work."""
    if batch <= align:
        return align
    half = _round_up(pl.cdiv(batch, 2), align)
    return max(align, min(max_batch_tile, half))


def _vmem_limit_bytes(prepped, tb, fin_k, dout_p):
    """Explicit scoped-VMEM budget (v5e default is only 16 MiB)."""
    wbytes = sum(int(w.size) * w.dtype.itemsize + int(b.size) * b.dtype.itemsize
                 for w, b in prepped)
    io = (3 * tb * fin_k + 2 * tb * dout_p) * 4        # buffered x + out tiles
    need = int(1.5 * (wbytes + io)) + (1 << 20)
    # NOTE(v7x): physical VMEM is 64 MiB/TC.  If the resident weight stack ever
    # grows to tens of MB, split layers across a second ("arbitrary") grid axis
    # instead of keeping everything resident.
    return max(32 * 1024 * 1024, min(need, 128 * 1024 * 1024))


def neural_network_forward(x, prepped_params, max_batch_tile=512):
    """Mirrors NeuralNetwork.forward: flatten, then the fused Linear(+ReLU) stack.

    Returns the PADDED (b_pad, Dout_pad) logits; padded rows/lanes are exact
    zeros of the computation.  Slice at the consumer (see unpad_logits) to keep
    the hot path to a single pallas_call.
    """
    B = x.shape[0]
    x = x.reshape(B, -1)                       # nn.Flatten()
    fin = x.shape[1]

    num_layers = len(prepped_params)
    fin_k = prepped_params[0][0].shape[0]      # layer-0 contraction width (>= fin)
    dout_p = prepped_params[-1][0].shape[1]    # padded output width
    mac_layer0 = fin_k < _SUBLANE

    use_bf16 = any(w.dtype == jnp.bfloat16 for w, _ in prepped_params)
    align = 16 if use_bf16 else _SUBLANE       # bf16 packs 16 rows per vreg
    tb = _pick_batch_tile(B, max_batch_tile, align)
    b_pad = _round_up(B, tb)
    num_tiles = b_pad // tb

    # Pad only when actually required (common aligned case: x goes straight in,
    # no extra HBM-touching XLA op).
    if b_pad != B or fin_k != fin:
        x = jnp.zeros((b_pad, fin_k), x.dtype).at[:B, :fin].set(x)

    kernel = functools.partial(_mlp_fused_kernel,
                               num_layers=num_layers, mac_layer0=mac_layer0)

    if num_tiles >= 3:
        # Weights are resident, so only x / out stream: deeper buffering on x
        # hides its DMA behind the per-tile MXU work at large batch.
        x_spec = pl.BlockSpec((tb, fin_k), lambda i: (i, 0),
                              pipeline_mode=pl.Buffered(3))
    else:
        x_spec = pl.BlockSpec((tb, fin_k), lambda i: (i, 0))

    in_specs = [x_spec]
    operands = [x]
    for w_t, b2 in prepped_params:
        # Same block for every batch tile -> VMEM-resident, no re-DMA per step.
        in_specs.append(pl.BlockSpec(w_t.shape, lambda i: (0, 0)))
        in_specs.append(pl.BlockSpec(b2.shape, lambda i: (0, 0)))
        operands.extend([w_t, b2])

    out_p = pl.pallas_call(
        kernel,
        out_shape=jax.ShapeDtypeStruct((b_pad, dout_p), jnp.float32),
        grid=(num_tiles,),
        in_specs=in_specs,
        out_specs=pl.BlockSpec((tb, dout_p), lambda i: (i, 0)),
        compiler_params=pltpu.CompilerParams(
            dimension_semantics=("parallel",),   # shard batch tiles across TCs (v7x)
            vmem_limit_bytes=_vmem_limit_bytes(prepped_params, tb, fin_k, dout_p)),
    )(*operands)
    return out_p


def unpad_logits(padded_logits, batch, out_features):
    """Consumer-side slice of the padded kernel output."""
    return padded_logits[:batch, :out_features]


# --------------------------------------------------------------------------
if __name__ == "__main__":
    # sizes consistent with the script's 2-feature input data
    sizes = (2, 32, 32, 2)
    batch = 8

    key = jax.random.PRNGKey(0)
    key, kx = jax.random.split(key)
    x = jax.random.normal(kx, (batch, sizes[0]), dtype=jnp.float32)

    params = init_params(sizes, key)           # PyTorch-layout (Dout, Din) weights

    # plain-JAX reference (exact module semantics, f32)
    ref = x.reshape(batch, -1)
    for i, (w, b) in enumerate(params):
        ref = ref @ w.T + b
        if i < len(params) - 1:
            ref = jnp.maximum(ref, 0.0)

    # --- f32 weights: exact module semantics ---
    prepped = prepare_params(params)                        # one-time layout work
    out_pad = neural_network_forward(x, prepped)
    jax.block_until_ready(out_pad)
    logits = unpad_logits(out_pad, batch, sizes[-1])        # slice at the consumer
    assert logits.shape == (batch, sizes[-1])
    assert jnp.allclose(logits, ref, atol=1e-5, rtol=1e-5)

    # --- bf16 weights: bf16 matmul operands, f32 bias/ReLU/accumulate ---
    prepped_bf16 = prepare_params(params, weight_dtype=jnp.bfloat16)
    out_pad_bf16 = neural_network_forward(x, prepped_bf16)
    jax.block_until_ready(out_pad_bf16)
    logits_bf16 = unpad_logits(out_pad_bf16, batch, sizes[-1])
    assert jnp.allclose(logits_bf16, ref, atol=1e-1, rtol=1e-1)

    print("KERNEL_OK")
</pallas_src>

<mosaic_0001>
module attributes {stable_mosaic.version = 11 : i64} {
  func.func @_mlp_fused_kernel(%arg0: i32, %arg1: memref<8x2xf32, #tpu.memory_space<vmem>>, %arg2: memref<2x128xf32, #tpu.memory_space<vmem>>, %arg3: memref<1x128xf32, #tpu.memory_space<vmem>>, %arg4: memref<128x128xf32, #tpu.memory_space<vmem>>, %arg5: memref<1x128xf32, #tpu.memory_space<vmem>>, %arg6: memref<128x128xf32, #tpu.memory_space<vmem>>, %arg7: memref<1x128xf32, #tpu.memory_space<vmem>>, %arg8: memref<8x128xf32, #tpu.memory_space<vmem>>) attributes {dimension_semantics = [#tpu.dimension_semantics<parallel>], iteration_bounds = array<i64: 1>, scalar_prefetch = 0 : i64, scratch_operands = 0 : i64, tpu.core_type = #tpu.core_type<tc>, window_params = [{transform_indices = @transform_0, window_bounds = array<i64: 8, 2>}, {pipeline_mode = #tpu.pipeline_mode<synchronous>, transform_indices = @transform_1, window_bounds = array<i64: 2, 128>}, {pipeline_mode = #tpu.pipeline_mode<synchronous>, transform_indices = @transform_2, window_bounds = array<i64: 1, 128>}, {pipeline_mode = #tpu.pipeline_mode<synchronous>, transform_indices = @transform_3, window_bounds = array<i64: 128, 128>}, {pipeline_mode = #tpu.pipeline_mode<synchronous>, transform_indices = @transform_4, window_bounds = array<i64: 1, 128>}, {pipeline_mode = #tpu.pipeline_mode<synchronous>, transform_indices = @transform_5, window_bounds = array<i64: 128, 128>}, {pipeline_mode = #tpu.pipeline_mode<synchronous>, transform_indices = @transform_6, window_bounds = array<i64: 1, 128>}, {transform_indices = @transform_7, window_bounds = array<i64: 8, 128>}]} {
    %c0 = arith.constant 0 : index
    %c0_0 = arith.constant 0 : index
    %0 = vector.load %arg1[%c0, %c0_0] : memref<8x2xf32, #tpu.memory_space<vmem>>, vector<8x2xf32>
    %1 = vector.extract_strided_slice %0 {offsets = [0, 0], sizes = [8, 1], strides = [1, 1]} : vector<8x2xf32> to vector<8x1xf32>
    %c0_1 = arith.constant 0 : index
    %c0_2 = arith.constant 0 : index
    %2 = vector.load %arg2[%c0_1, %c0_2] : memref<2x128xf32, #tpu.memory_space<vmem>>, vector<1x128xf32>
    %3 = vector.broadcast %1 : vector<8x1xf32> to vector<8x128xf32>
    %4 = vector.broadcast %2 : vector<1x128xf32> to vector<8x128xf32>
    %5 = arith.mulf %3, %4 : vector<8x128xf32>
    %6 = vector.extract_strided_slice %0 {offsets = [0, 1], sizes = [8, 1], strides = [1, 1]} : vector<8x2xf32> to vector<8x1xf32>
    %c1 = arith.constant 1 : index
    %c0_3 = arith.constant 0 : index
    %7 = vector.load %arg2[%c1, %c0_3] : memref<2x128xf32, #tpu.memory_space<vmem>>, vector<1x128xf32>
    %8 = vector.broadcast %6 : vector<8x1xf32> to vector<8x128xf32>
    %9 = vector.broadcast %7 : vector<1x128xf32> to vector<8x128xf32>
    %10 = arith.mulf %8, %9 : vector<8x128xf32>
    %11 = arith.addf %5, %10 : vector<8x128xf32>
    %c0_4 = arith.constant 0 : index
    %c0_5 = arith.constant 0 : index
    %12 = vector.load %arg3[%c0_4, %c0_5] : memref<1x128xf32, #tpu.memory_space<vmem>>, vector<1x128xf32>
    %13 = vector.broadcast %12 : vector<1x128xf32> to vector<8x128xf32>
    %14 = arith.addf %11, %13 : vector<8x128xf32>
    %cst = arith.constant 0.000000e+00 : f32
    %15 = vector.broadcast %cst : f32 to vector<8x128xf32>
    %16 = arith.maximumf %14, %15 : vector<8x128xf32>
    %c0_6 = arith.constant 0 : index
    %c0_7 = arith.constant 0 : index
    %17 = vector.load %arg4[%c0_6, %c0_7] : memref<128x128xf32, #tpu.memory_space<vmem>>, vector<128x128xf32>
    %cst_8 = arith.constant dense<0.000000e+00> : vector<8x128xf32>
    %18 = tpu.matmul %16, %17, %cst_8 {dimension_numbers = #tpu.dot_dimension_numbers<[1], [0], [0], [1], [0, 0, 1, 1], [], []>} : vector<8x128xf32>, vector<128x128xf32>, vector<8x128xf32> -> vector<8x128xf32>
    %c0_9 = arith.constant 0 : index
    %c0_10 = arith.constant 0 : index
    %19 = vector.load %arg5[%c0_9, %c0_10] : memref<1x128xf32, #tpu.memory_space<vmem>>, vector<1x128xf32>
    %20 = vector.broadcast %19 : vector<1x128xf32> to vector<8x128xf32>
    %21 = arith.addf %18, %20 : vector<8x128xf32>
    %cst_11 = arith.constant 0.000000e+00 : f32
    %22 = vector.broadcast %cst_11 : f32 to vector<8x128xf32>
    %23 = arith.maximumf %21, %22 : vector<8x128xf32>
    %c0_12 = arith.constant 0 : index
    %c0_13 = arith.constant 0 : index
    %24 = vector.load %arg6[%c0_12, %c0_13] : memref<128x128xf32, #tpu.memory_space<vmem>>, vector<128x128xf32>
    %cst_14 = arith.constant dense<0.000000e+00> : vector<8x128xf32>
    %25 = tpu.matmul %23, %24, %cst_14 {dimension_numbers = #tpu.dot_dimension_numbers<[1], [0], [0], [1], [0, 0, 1, 1], [], []>} : vector<8x128xf32>, vector<128x128xf32>, vector<8x128xf32> -> vector<8x128xf32>
    %c0_15 = arith.constant 0 : index
    %c0_16 = arith.constant 0 : index
    %26 = vector.load %arg7[%c0_15, %c0_16] : memref<1x128xf32, #tpu.memory_space<vmem>>, vector<1x128xf32>
    %27 = vector.broadcast %26 : vector<1x128xf32> to vector<8x128xf32>
    %28 = arith.addf %25, %27 : vector<8x128xf32>
    %c0_17 = arith.constant 0 : index
    %c0_18 = arith.constant 0 : index
    %29 = vector.load %arg8[%c0_17, %c0_18] : memref<8x128xf32, #tpu.memory_space<vmem>>, vector<8x128xf32>
    tpu.vector_store %arg8[%c0_17, %c0_18], %28 {strides = array<i32>} : memref<8x128xf32, #tpu.memory_space<vmem>>, vector<8x128xf32>,
    return
  }
  func.func @transform_0(%arg0: i32) -> (i32, i32) {
    %c0_i32 = arith.constant 0 : i32
    %c0_i32_0 = arith.constant 0 : i32
    return %arg0, %c0_i32 : i32, i32
  }
  func.func @transform_1(%arg0: i32) -> (i32, i32) {
    %c0_i32 = arith.constant 0 : i32
    %c0_i32_0 = arith.constant 0 : i32
    %c0_i32_1 = arith.constant 0 : i32
    return %c0_i32, %c0_i32_0 : i32, i32
  }
  func.func @transform_2(%arg0: i32) -> (i32, i32) {
    %c0_i32 = arith.constant 0 : i32
    %c0_i32_0 = arith.constant 0 : i32
    %c0_i32_1 = arith.constant 0 : i32
    return %c0_i32, %c0_i32_0 : i32, i32
  }
  func.func @transform_3(%arg0: i32) -> (i32, i32) {
    %c0_i32 = arith.constant 0 : i32
    %c0_i32_0 = arith.constant 0 : i32
    %c0_i32_1 = arith.constant 0 : i32
    return %c0_i32, %c0_i32_0 : i32, i32
  }
  func.func @transform_4(%arg0: i32) -> (i32, i32) {
    %c0_i32 = arith.constant 0 : i32
    %c0_i32_0 = arith.constant 0 : i32
    %c0_i32_1 = arith.constant 0 : i32
    return %c0_i32, %c0_i32_0 : i32, i32
  }
  func.func @transform_5(%arg0: i32) -> (i32, i32) {
    %c0_i32 = arith.constant 0 : i32
    %c0_i32_0 = arith.constant 0 : i32
    %c0_i32_1 = arith.constant 0 : i32
    return %c0_i32, %c0_i32_0 : i32, i32
  }
  func.func @transform_6(%arg0: i32) -> (i32, i32) {
    %c0_i32 = arith.constant 0 : i32
    %c0_i32_0 = arith.constant 0 : i32
    %c0_i32_1 = arith.constant 0 : i32
    return %c0_i32, %c0_i32_0 : i32, i32
  }
  func.func @transform_7(%arg0: i32) -> (i32, i32) {
    %c0_i32 = arith.constant 0 : i32
    %c0_i32_0 = arith.constant 0 : i32
    return %arg0, %c0_i32 : i32, i32
  }
}

</mosaic_0001>

<llo_original>
// kernel: tpu_custom_call.1
$region0: #{tpu_custom_call.1}
  #allocation0 [shape = 'u32[]', space=smem, size = 0x4, offset = 0x4, fixed_abs, tag = 'smem constant byte address 0x4 - core index']
  #allocation1 [shape = 'u32[144,128]{1,0:T(1,128)}', space=vmem, size = 0x12000, scoped, tag = 'internal scratch']
  %s0 = inlined_call_operand.vmem [shape: f32[8,2], index: 0, kind: input, shape index: {}]
  %s1 = inlined_call_operand.vmem [shape: f32[2,128], index: 1, kind: input, shape index: {}]
  %s2 = inlined_call_operand.vmem [shape: f32[1,128], index: 2, kind: input, shape index: {}]
  %s3 = inlined_call_operand.hbm [shape: f32[128,128], index: 3, kind: input, shape index: {}]
  %s4 = inlined_call_operand.vmem [shape: f32[1,128], index: 4, kind: input, shape index: {}]
  %s5 = inlined_call_operand.hbm [shape: f32[128,128], index: 5, kind: input, shape index: {}]
  %s6 = inlined_call_operand.vmem [shape: f32[1,128], index: 6, kind: input, shape index: {}]
  %s7 = inlined_call_operand.hbm [shape: f32[8,128], index: 7, kind: output, shape index: {}]
  %s8 = sld [smem:[#allocation0]]
  $region46: #{tpu_custom_call.1} parent=0
    _
  %s10 = ssub.s32 1, %s8
  %s11 = scalar_select 0, %s10, %s8
  $region1: #{tpu_custom_call.1} parent=0
    #allocation2 [shape = 'u8[65536]{0}', space=vmem, size = 0x10000, scoped, tag = 'input window, operand 3, single buffered']
    #allocation3 [shape = 's32[1]{0}', space=sflag, size = 0x4, scoped, tag = 'scoped memory for tpu_custom_call.1']
    #allocation4 [shape = 's32[1]{0}', space=sflag, size = 0x4, scoped, tag = 'scoped memory for tpu_custom_call.1']
    #allocation5 [shape = 'u8[65536]{0}', space=vmem, size = 0x10000, scoped, tag = 'input window, operand 5, single buffered']
    #allocation6 [shape = 's32[1]{0}', space=sflag, size = 0x4, scoped, tag = 'scoped memory for tpu_custom_call.1']
    #allocation7 [shape = 'u8[4096]{0}', space=vmem, size = 0x1000, scoped, tag = 'output window, operand 0, single buffered']
    %12 = vsyncpa [#allocation3], 0
    %13 = vsyncpa [#allocation6], 0
    %14 = vsyncpa [#allocation4], 0
    // Predicated region
    $region2: #{tpu_custom_call.1} parent=1 // pred_check
      _
    $region3: #{tpu_custom_call.1} parent=1 // pred_check_branch
      %16 = sbr.rel (0) target = $region5
    $region4: #{tpu_custom_call.1} parent=1 // pred_region
      _
    $region5: #{tpu_custom_call.1} parent=1 // pred_fallthru
      _
    // Predicated region
    $region6: #{tpu_custom_call.1} parent=1 // pred_check
      _
    $region7: #{tpu_custom_call.1} parent=1 // pred_check_branch
      %18 = sbr.rel (0) target = $region9
    $region8: #{tpu_custom_call.1} parent=1 // pred_region
      _
    $region9: #{tpu_custom_call.1} parent=1 // pred_fallthru
      _
    // Predicated region
    $region10: #{tpu_custom_call.1} parent=1 // pred_check
      _
    $region11: #{tpu_custom_call.1} parent=1 // pred_check_branch
      %20 = sbr.rel (0) target = $region13
    $region12: #{tpu_custom_call.1} parent=1 // pred_region
      _
    $region13: #{tpu_custom_call.1} parent=1 // pred_fallthru
      _
    // Predicated region
    $region14: #{tpu_custom_call.1} parent=1 // pred_check
      _
    $region15: #{tpu_custom_call.1} parent=1 // pred_check_branch
      %22 = sbr.rel (0) target = $region17
    $region16: #{tpu_custom_call.1} parent=1 // pred_region
      %s24 = ssub.s32 2048, 2048
      %25 = vsyncadd [#allocation3], %s24
      %s26 = sshll.u32 [#allocation2], 4
      %s27 = int_to_ptr.vmem [resolvable:$true] %s26
      %32 = dma.hbm_to_vmem [thread:$0]  %s3, 2048, %s27, [#allocation3], 128, 128, 8
    $region17: #{tpu_custom_call.1} parent=1 // pred_fallthru
      _
    // Predicated region
    $region18: #{tpu_custom_call.1} parent=1 // pred_check
      _
    $region19: #{tpu_custom_call.1} parent=1 // pred_check_branch
      %34 = sbr.rel (0) target = $region21
    $region20: #{tpu_custom_call.1} parent=1 // pred_region
      _
    $region21: #{tpu_custom_call.1} parent=1 // pred_fallthru
      _
    // Predicated region
    $region22: #{tpu_custom_call.1} parent=1 // pred_check
      _
    $region23: #{tpu_custom_call.1} parent=1 // pred_check_branch
      %36 = sbr.rel (0) target = $region25
    $region24: #{tpu_custom_call.1} parent=1 // pred_region
      %s38 = ssub.s32 2048, 2048
      %39 = vsyncadd [#allocation6], %s38
      %s40 = sshll.u32 [#allocation5], 4
      %s41 = int_to_ptr.vmem [resolvable:$true] %s40
      %46 = dma.hbm_to_vmem [thread:$0]  %s5, 2048, %s41, [#allocation6], 128, 128, 8
    $region25: #{tpu_custom_call.1} parent=1 // pred_fallthru
      _
    // Predicated region
    $region26: #{tpu_custom_call.1} parent=1 // pred_check
      _
    $region27: #{tpu_custom_call.1} parent=1 // pred_check_branch
      %48 = sbr.rel (0) target = $region29
    $region28: #{tpu_custom_call.1} parent=1 // pred_region
      _
    $region29: #{tpu_custom_call.1} parent=1 // pred_fallthru
      _
    // Predicated region
    $region30: #{tpu_custom_call.1} parent=1 // pred_check
      _
    $region31: #{tpu_custom_call.1} parent=1 // pred_check_branch
      %50 = sbr.rel (0) target = $region33
    $region32: #{tpu_custom_call.1} parent=1 // pred_region
      %51 = dma.done [#allocation3], 2048
    $region33: #{tpu_custom_call.1} parent=1 // pred_fallthru
      _
    // Predicated region
    $region34: #{tpu_custom_call.1} parent=1 // pred_check
      _
    $region35: #{tpu_custom_call.1} parent=1 // pred_check_branch
      %53 = sbr.rel (0) target = $region37
    $region36: #{tpu_custom_call.1} parent=1 // pred_region
      %54 = dma.done [#allocation6], 2048
    $region37: #{tpu_custom_call.1} parent=1 // pred_fallthru
      _
    %v55 = vld [vmem:[%s0] sm:$0xff]
    %v56 = vld [vmem:[%s1] sm:$0x1]
    %58 = vset.pattern.permute.xlu0 0
    %59 = vperm.xlu0 %58, %v55
    %v60 = vpop.permute.xlu0 %59
    %v62 = vlaneseq
    %v63 = vshrl.u32 %v62, 7
    %v64 = vsub.s32 0, %v63
    %v65 = vrot.slane %v56, %v64
    %v66 = vmul.f32 %v60, %v65
    %v67 = vld [vmem:[%s1 + $0x1] sm:$0x1]
    %68 = vset.pattern.permute.xlu0 1
    %69 = vperm.xlu0 %68, %v55
    %v70 = vpop.permute.xlu0 %69
    %v72 = vlaneseq
    %v73 = vshrl.u32 %v72, 7
    %v74 = vsub.s32 0, %v73
    %v75 = vrot.slane %v67, %v74
    %v76 = vmul.f32 %v70, %v75
    %v77 = vadd.f32 %v66, %v76
    %v78 = vld [vmem:[%s2] sm:$0x1]
    %v80 = vlaneseq
    %v81 = vshrl.u32 %v80, 7
    %v82 = vsub.s32 0, %v81
    %v83 = vrot.slane %v78, %v82
    %v85 = vadd.f32 %v77, %v83
    %v86 = vmax.f32 %v85, 0.0
    %v87 = vld [vmem:[#allocation2] sm:$0xff]
    %v88 = vld [vmem:[#allocation2 + $0x8] sm:$0xff]
    %v89 = vld [vmem:[#allocation2 + $0x10] sm:$0xff]
    %v90 = vld [vmem:[#allocation2 + $0x18] sm:$0xff]
    %v91 = vld [vmem:[#allocation2 + $0x20] sm:$0xff]
    %v92 = vld [vmem:[#allocation2 + $0x28] sm:$0xff]
    %v93 = vld [vmem:[#allocation2 + $0x30] sm:$0xff]
    %v94 = vld [vmem:[#allocation2 + $0x38] sm:$0xff]
    %v95 = vld [vmem:[#allocation2 + $0x40] sm:$0xff]
    %v96 = vld [vmem:[#allocation2 + $0x48] sm:$0xff]
    %v97 = vld [vmem:[#allocation2 + $0x50] sm:$0xff]
    %v98 = vld [vmem:[#allocation2 + $0x58] sm:$0xff]
    %v99 = vld [vmem:[#allocation2 + $0x60] sm:$0xff]
    %v100 = vld [vmem:[#allocation2 + $0x68] sm:$0xff]
    %v101 = vld [vmem:[#allocation2 + $0x70] sm:$0xff]
    %v102 = vld [vmem:[#allocation2 + $0x78] sm:$0xff]
    %v103 = vld [vmem:[%s4] sm:$0x1]
    %v105 = vlaneseq
    %v106 = vshrl.u32 %v105, 7
    %v107 = vsub.s32 0, %v106
    %v108 = vrot.slane %v103, %v107
    %110 = vmatprep.subr.mxu0 0.0
    %111 = vmatpush1.msra.mxu0 %v87
    %112 = vmatprep.subr.mxu0 0.0
    %113 = vmatpush1.msra.mxu0 %v88
    %114 = vmatprep.subr.mxu0 0.0
    %115 = vmatpush1.msra.mxu0 %v89
    %116 = vmatprep.subr.mxu0 0.0
    %117 = vmatpush1.msra.mxu0 %v90
    %118 = vmatprep.subr.mxu0 0.0
    %119 = vmatpush1.msra.mxu0 %v91
    %120 = vmatprep.subr.mxu0 0.0
    %121 = vmatpush1.msra.mxu0 %v92
    %122 = vmatprep.subr.mxu0 0.0
    %123 = vmatpush1.msra.mxu0 %v93
    %124 = vmatprep.subr.mxu0 0.0
    %125 = vmatpush1.msra.mxu0 %v94
    %126 = vmatprep.subr.mxu0 0.0
    %127 = vmatpush1.msra.mxu0 %v95
    %128 = vmatprep.subr.mxu0 0.0
    %129 = vmatpush1.msra.mxu0 %v96
    %130 = vmatprep.subr.mxu0 0.0
    %131 = vmatpush1.msra.mxu0 %v97
    %132 = vmatprep.subr.mxu0 0.0
    %133 = vmatpush1.msra.mxu0 %v98
    %134 = vmatprep.subr.mxu0 0.0
    %135 = vmatpush1.msra.mxu0 %v99
    %136 = vmatprep.subr.mxu0 0.0
    %137 = vmatpush1.msra.mxu0 %v100
    %138 = vmatprep.subr.mxu0 0.0
    %139 = vmatpush1.msra.mxu0 %v101
    %140 = vmatprep.subr.mxu0 0.0
    %141 = vmatpush1.msra.mxu0 %v102
    %142 = vmatprep.subr.mxu0 0.0
    %143 = vmatpush1.msra.mxu0 0.0
    %144 = vmatprep.subr.mxu0 0.0
    %145 = vmatpush1.msra.mxu0 0.0
    %146 = vmatprep.subr.mxu0 0.0
    %147 = vmatpush1.msra.mxu0 0.0
    %148 = vmatprep.subr.mxu0 0.0
    %149 = vmatpush1.msra.mxu0 0.0
    %150 = vmatprep.subr.mxu0 0.0
    %151 = vmatpush1.msra.mxu0 0.0
    %152 = vmatprep.subr.mxu0 0.0
    %153 = vmatpush1.msra.mxu0 0.0
    %154 = vmatprep.subr.mxu0 0.0
    %155 = vmatpush1.msra.mxu0 0.0
    %156 = vmatprep.subr.mxu0 0.0
    %157 = vmatpush1.msra.mxu0 0.0
    %158 = vmatprep.subr.mxu0 0.0
    %159 = vmatpush1.msra.mxu0 0.0
    %160 = vmatprep.subr.mxu0 0.0
    %161 = vmatpush1.msra.mxu0 0.0
    %162 = vmatprep.subr.mxu0 0.0
    %163 = vmatpush1.msra.mxu0 0.0
    %164 = vmatprep.subr.mxu0 0.0
    %165 = vmatpush1.msra.mxu0 0.0
    %166 = vmatprep.subr.mxu0 0.0
    %167 = vmatpush1.msra.mxu0 0.0
    %168 = vmatprep.subr.mxu0 0.0
    %169 = vmatpush1.msra.mxu0 0.0
    %170 = vmatprep.subr.mxu0 0.0
    %171 = vmatpush1.msra.mxu0 0.0
    %172 = vmatprep.subr.mxu0 0.0
    %173 = vmatpush1.msra.mxu0 0.0
    %174 = vmatprep.mubr.f32.mxu0 0.0
    %175 = vmatmul.mubr.f32.gmra.mrb[0].mxu0 %v86
    %v176 = vpop.f32.mrb[0].mxu0
    %v177 = vadd.f32 %v108, %v176
    %v178 = vpop.f32.mrb[0].mxu0
    %179 = vdwg.mxu0
    %v180 = vmax.f32 %v177, 0.0
    %v181 = vld [vmem:[#allocation5] sm:$0xff]
    %v182 = vld [vmem:[#allocation5 + $0x8] sm:$0xff]
    %v183 = vld [vmem:[#allocation5 + $0x10] sm:$0xff]
    %v184 = vld [vmem:[#allocation5 + $0x18] sm:$0xff]
    %v185 = vld [vmem:[#allocation5 + $0x20] sm:$0xff]
    %v186 = vld [vmem:[#allocation5 + $0x28] sm:$0xff]
    %v187 = vld [vmem:[#allocation5 + $0x30] sm:$0xff]
    %v188 = vld [vmem:[#allocation5 + $0x38] sm:$0xff]
    %v189 = vld [vmem:[#allocation5 + $0x40] sm:$0xff]
    %v190 = vld [vmem:[#allocation5 + $0x48] sm:$0xff]
    %v191 = vld [vmem:[#allocation5 + $0x50] sm:$0xff]
    %v192 = vld [vmem:[#allocation5 + $0x58] sm:$0xff]
    %v193 = vld [vmem:[#allocation5 + $0x60] sm:$0xff]
    %v194 = vld [vmem:[#allocation5 + $0x68] sm:$0xff]
    %v195 = vld [vmem:[#allocation5 + $0x70] sm:$0xff]
    %v196 = vld [vmem:[#allocation5 + $0x78] sm:$0xff]
    %v197 = vld [vmem:[%s6] sm:$0x1]
    %v199 = vlaneseq
    %v200 = vshrl.u32 %v199, 7
    %v201 = vsub.s32 0, %v200
    %v202 = vrot.slane %v197, %v201
    %204 = vmatprep.subr.mxu0 0.0
    %205 = vmatpush1.msra.mxu0 %v181
    %206 = vmatprep.subr.mxu0 0.0
    %207 = vmatpush1.msra.mxu0 %v182
    %208 = vmatprep.subr.mxu0 0.0
    %209 = vmatpush1.msra.mxu0 %v183
    %210 = vmatprep.subr.mxu0 0.0
    %211 = vmatpush1.msra.mxu0 %v184
    %212 = vmatprep.subr.mxu0 0.0
    %213 = vmatpush1.msra.mxu0 %v185
    %214 = vmatprep.subr.mxu0 0.0
    %215 = vmatpush1.msra.mxu0 %v186
    %216 = vmatprep.subr.mxu0 0.0
    %217 = vmatpush1.msra.mxu0 %v187
    %218 = vmatprep.subr.mxu0 0.0
    %219 = vmatpush1.msra.mxu0 %v188
    %220 = vmatprep.subr.mxu0 0.0
    %221 = vmatpush1.msra.mxu0 %v189
    %222 = vmatprep.subr.mxu0 0.0
    %223 = vmatpush1.msra.mxu0 %v190
    %224 = vmatprep.subr.mxu0 0.0
    %225 = vmatpush1.msra.mxu0 %v191
    %226 = vmatprep.subr.mxu0 0.0
    %227 = vmatpush1.msra.mxu0 %v192
    %228 = vmatprep.subr.mxu0 0.0
    %229 = vmatpush1.msra.mxu0 %v193
    %230 = vmatprep.subr.mxu0 0.0
    %231 = vmatpush1.msra.mxu0 %v194
    %232 = vmatprep.subr.mxu0 0.0
    %233 = vmatpush1.msra.mxu0 %v195
    %234 = vmatprep.subr.mxu0 0.0
    %235 = vmatpush1.msra.mxu0 %v196
    %236 = vmatprep.subr.mxu0 0.0
    %237 = vmatpush1.msra.mxu0 0.0
    %238 = vmatprep.subr.mxu0 0.0
    %239 = vmatpush1.msra.mxu0 0.0
    %240 = vmatprep.subr.mxu0 0.0
    %241 = vmatpush1.msra.mxu0 0.0
    %242 = vmatprep.subr.mxu0 0.0
    %243 = vmatpush1.msra.mxu0 0.0
    %244 = vmatprep.subr.mxu0 0.0
    %245 = vmatpush1.msra.mxu0 0.0
    %246 = vmatprep.subr.mxu0 0.0
    %247 = vmatpush1.msra.mxu0 0.0
    %248 = vmatprep.subr.mxu0 0.0
    %249 = vmatpush1.msra.mxu0 0.0
    %250 = vmatprep.subr.mxu0 0.0
    %251 = vmatpush1.msra.mxu0 0.0
    %252 = vmatprep.subr.mxu0 0.0
    %253 = vmatpush1.msra.mxu0 0.0
    %254 = vmatprep.subr.mxu0 0.0
    %255 = vmatpush1.msra.mxu0 0.0
    %256 = vmatprep.subr.mxu0 0.0
    %257 = vmatpush1.msra.mxu0 0.0
    %258 = vmatprep.subr.mxu0 0.0
    %259 = vmatpush1.msra.mxu0 0.0
    %260 = vmatprep.subr.mxu0 0.0
    %261 = vmatpush1.msra.mxu0 0.0
    %262 = vmatprep.subr.mxu0 0.0
    %263 = vmatpush1.msra.mxu0 0.0
    %264 = vmatprep.subr.mxu0 0.0
    %265 = vmatpush1.msra.mxu0 0.0
    %266 = vmatprep.subr.mxu0 0.0
    %267 = vmatpush1.msra.mxu0 0.0
    %268 = vmatprep.mubr.f32.mxu0 0.0
    %269 = vmatmul.mubr.f32.gmra.mrb[0].mxu0 %v180
    %v270 = vpop.f32.mrb[0].mxu0
    %v271 = vadd.f32 %v202, %v270
    %v272 = vpop.f32.mrb[0].mxu0
    %273 = vdwg.mxu0
    %274 = vst [vmem:[#allocation7] sm:$0xff] %v271
    // Predicated region
    $region38: #{tpu_custom_call.1} parent=1 // pred_check
      _
    $region39: #{tpu_custom_call.1} parent=1 // pred_check_branch
      %276 = sbr.rel (0) target = $region41
    $region40: #{tpu_custom_call.1} parent=1 // pred_region
      %s278 = ssub.s32 128, 128
      %279 = vsyncadd [#allocation4], %s278
      %s281 = sshll.u32 [#allocation7], 4
      %s282 = int_to_ptr.vmem [resolvable:$true] %s281
      %284 = dma.vmem_to_hbm [thread:$0]  %s282, 128, %s7, [#allocation4]
    $region41: #{tpu_custom_call.1} parent=1 // pred_fallthru
      _
    // Predicated region
    $region42: #{tpu_custom_call.1} parent=1 // pred_check
      _
    $region43: #{tpu_custom_call.1} parent=1 // pred_check_branch
      %286 = sbr.rel (0) target = $region45
    $region44: #{tpu_custom_call.1} parent=1 // pred_region
      %287 = dma.done [#allocation4], 128
    $region45: #{tpu_custom_call.1} parent=1 // pred_fallthru
      _
    %288 = vsyncpa [#allocation3], 1
    %289 = vsyncpa [#allocation6], 1
    %290 = vsyncpa [#allocation4], 1

</llo_original>
